<compile_context>
chip_gen: v5e
topology: v5e:2x2
jax: 0.10.0
libtpu: 0.0.40
codegen_flags: <defaults>
</compile_context>

<pallas_src>
import jax
import jax.numpy as jnp
from jax.experimental import pallas as pl
from jax.experimental.pallas import tpu as pltpu

IN_FEATURES = 21 * 12 * 2   # 504
HIDDEN = 64
OUT_FEATURES = 21 * 6       # 126

# Lane-padded (128-aligned) shapes used inside the kernel.
K_PAD = 512     # 504 -> 512  (4 clean 128-deep MXU passes)
H_PAD = 128     # 64  -> 128  (full MXU column occupancy)
N_PAD = 128     # 126 -> 128  (unmasked lane-dense output stores)

# Batch tile: multiple of 8 (sublane), capped so double-buffered x/out tiles
# fit comfortably under the default scoped VMEM on every TPU generation.
MAX_TILE_B = 1024


def _round_up(x, m):
    return (x + m - 1) // m * m


def densenet_kernel(x_ref, w1_ref, b1_ref, w2_ref, b2_ref, w3_ref, b3_ref, o_ref):
    # One batch tile: 3 fused matmuls (bf16 operands, f32 accumulate) + biases + ReLUs.
    x = x_ref[...]                                                       # (TILE_B, 512) bf16
    h1 = jnp.dot(x, w1_ref[...], preferred_element_type=jnp.float32) + b1_ref[...]
    h1 = jnp.maximum(h1, 0.0).astype(jnp.bfloat16)                       # (TILE_B, 128)
    h2 = jnp.dot(h1, w2_ref[...], preferred_element_type=jnp.float32) + b2_ref[...]
    h2 = jnp.maximum(h2, 0.0).astype(jnp.bfloat16)                       # (TILE_B, 128)
    h3 = jnp.dot(h2, w3_ref[...], preferred_element_type=jnp.float32) + b3_ref[...]
    o_ref[...] = h3.astype(o_ref.dtype)                                  # (TILE_B, 128) f32


def init_params(key):
    """nn.Linear-style init, U(-1/sqrt(fan_in), 1/sqrt(fan_in)).
    Weights stored pre-transposed as (in_features, out_features), f32, unpadded."""
    keys = jax.random.split(key, 6)

    def linear(kw, kb, fan_in, fan_out):
        bound = 1.0 / jnp.sqrt(fan_in)
        w = jax.random.uniform(kw, (fan_in, fan_out), jnp.float32, -bound, bound)
        b = jax.random.uniform(kb, (1, fan_out), jnp.float32, -bound, bound)
        return w, b

    w1, b1 = linear(keys[0], keys[1], IN_FEATURES, HIDDEN)
    w2, b2 = linear(keys[2], keys[3], HIDDEN, HIDDEN)
    w3, b3 = linear(keys[4], keys[5], HIDDEN, OUT_FEATURES)
    return (w1, b1, w2, b2, w3, b3)


def prepare_params(params):
    """One-time: zero-pad every lane dim to 128; cast weights to bf16, biases stay f32."""
    w1, b1, w2, b2, w3, b3 = params

    def pad_to(a, shape):
        out = jnp.zeros(shape, a.dtype)
        return out.at[tuple(slice(0, s) for s in a.shape)].set(a)

    w1p = pad_to(w1, (K_PAD, H_PAD)).astype(jnp.bfloat16)
    w2p = pad_to(w2, (H_PAD, H_PAD)).astype(jnp.bfloat16)
    w3p = pad_to(w3, (H_PAD, N_PAD)).astype(jnp.bfloat16)
    b1p = pad_to(b1, (1, H_PAD)).astype(jnp.float32)
    b2p = pad_to(b2, (1, H_PAD)).astype(jnp.float32)
    b3p = pad_to(b3, (1, N_PAD)).astype(jnp.float32)
    return (w1p, b1p, w2p, b2p, w3p, b3p)


def densenet_forward(x, prepared_params):
    """x: (B, 2, 21, 12) float32 NCHW. Returns (B, 6, 21, 1) float32."""
    w1, b1, w2, b2, w3, b3 = prepared_params
    B = x.shape[0]

    tile_b = min(MAX_TILE_B, _round_up(B, 8))
    b_pad = _round_up(B, tile_b)
    grid = (pl.cdiv(b_pad, tile_b),)

    # Flatten, zero-pad batch + feature lanes, cast x to bf16 once.
    x_flat = x.reshape(B, IN_FEATURES)
    x_p = jnp.zeros((b_pad, K_PAD), jnp.bfloat16)
    x_p = x_p.at[:B, :IN_FEATURES].set(x_flat.astype(jnp.bfloat16))

    flops = 2 * b_pad * (K_PAD * H_PAD + H_PAD * H_PAD + H_PAD * N_PAD)
    bytes_accessed = (
        x_p.size * 2
        + (w1.size + w2.size + w3.size) * 2
        + (b1.size + b2.size + b3.size) * 4
        + b_pad * N_PAD * 4
    )

    out_p = pl.pallas_call(
        densenet_kernel,
        out_shape=jax.ShapeDtypeStruct((b_pad, N_PAD), jnp.float32),
        grid=grid,
        in_specs=[
            pl.BlockSpec((tile_b, K_PAD), lambda i: (i, 0)),   # x batch tile
            pl.BlockSpec((K_PAD, H_PAD), lambda i: (0, 0)),    # w1 (VMEM-resident)
            pl.BlockSpec((1, H_PAD), lambda i: (0, 0)),        # b1
            pl.BlockSpec((H_PAD, H_PAD), lambda i: (0, 0)),    # w2
            pl.BlockSpec((1, H_PAD), lambda i: (0, 0)),        # b2
            pl.BlockSpec((H_PAD, N_PAD), lambda i: (0, 0)),    # w3
            pl.BlockSpec((1, N_PAD), lambda i: (0, 0)),        # b3
        ],
        out_specs=pl.BlockSpec((tile_b, N_PAD), lambda i: (i, 0)),
        compiler_params=pltpu.CompilerParams(
            dimension_semantics=("parallel",)),
        cost_estimate=pl.CostEstimate(
            flops=flops, transcendentals=0, bytes_accessed=bytes_accessed),
    )(x_p, w1, b1, w2, b2, w3, b3)

    # Slice lane-dense (B_pad, 128) slab back to real rows/cols, then the
    # module-mandated NCHW-ish reshape (B, 6, 21, 1).
    out_flat = out_p[:B, :OUT_FEATURES]
    return out_flat.reshape(B, 6, 21, 1)


def densenet_reference(x, params):
    """Pure-JAX reference with the same bf16-operand / f32-accumulate numerics."""
    w1, b1, w2, b2, w3, b3 = params
    B = x.shape[0]
    h = x.reshape(B, -1).astype(jnp.bfloat16)
    h = jnp.maximum(
        jnp.dot(h, w1.astype(jnp.bfloat16), preferred_element_type=jnp.float32) + b1, 0.0
    ).astype(jnp.bfloat16)
    h = jnp.maximum(
        jnp.dot(h, w2.astype(jnp.bfloat16), preferred_element_type=jnp.float32) + b2, 0.0
    ).astype(jnp.bfloat16)
    h = jnp.dot(h, w3.astype(jnp.bfloat16), preferred_element_type=jnp.float32) + b3
    return h.reshape(B, 6, 21, 1)


if __name__ == "__main__":
    key = jax.random.PRNGKey(0)
    k_x, k_p = jax.random.split(key)

    # Small input consistent with the module: (B, 2, 21, 12) -> 504 features,
    # shape[2] = 21 so the output reshape (B, 6, 21, 1) is valid.
    B = 8
    x = jax.random.normal(k_x, (B, 2, 21, 12), dtype=jnp.float32)

    params = init_params(k_p)
    prepared = prepare_params(params)

    fwd = jax.jit(densenet_forward)
    out = fwd(x, prepared)
    out = jax.block_until_ready(out)

    ref = densenet_reference(x, params)
    assert out.shape == (B, 6, 21, 1), out.shape
    assert jnp.allclose(out, ref, atol=1e-3, rtol=1e-3), "mismatch vs reference"

    print("KERNEL_OK")
</pallas_src>

<mosaic_0001>
module attributes {stable_mosaic.version = 11 : i64} {
  func.func @densenet_kernel(%arg0: i32, %arg1: memref<8x512xbf16, #tpu.memory_space<vmem>>, %arg2: memref<512x128xbf16, #tpu.memory_space<vmem>>, %arg3: memref<1x128xf32, #tpu.memory_space<vmem>>, %arg4: memref<128x128xbf16, #tpu.memory_space<vmem>>, %arg5: memref<1x128xf32, #tpu.memory_space<vmem>>, %arg6: memref<128x128xbf16, #tpu.memory_space<vmem>>, %arg7: memref<1x128xf32, #tpu.memory_space<vmem>>, %arg8: memref<8x128xf32, #tpu.memory_space<vmem>>) attributes {dimension_semantics = [#tpu.dimension_semantics<parallel>], iteration_bounds = array<i64: 1>, scalar_prefetch = 0 : i64, scratch_operands = 0 : i64, tpu.core_type = #tpu.core_type<tc>, window_params = [{transform_indices = @transform_0, window_bounds = array<i64: 8, 512>}, {pipeline_mode = #tpu.pipeline_mode<synchronous>, transform_indices = @transform_1, window_bounds = array<i64: 512, 128>}, {pipeline_mode = #tpu.pipeline_mode<synchronous>, transform_indices = @transform_2, window_bounds = array<i64: 1, 128>}, {pipeline_mode = #tpu.pipeline_mode<synchronous>, transform_indices = @transform_3, window_bounds = array<i64: 128, 128>}, {pipeline_mode = #tpu.pipeline_mode<synchronous>, transform_indices = @transform_4, window_bounds = array<i64: 1, 128>}, {pipeline_mode = #tpu.pipeline_mode<synchronous>, transform_indices = @transform_5, window_bounds = array<i64: 128, 128>}, {pipeline_mode = #tpu.pipeline_mode<synchronous>, transform_indices = @transform_6, window_bounds = array<i64: 1, 128>}, {transform_indices = @transform_7, window_bounds = array<i64: 8, 128>}]} {
    %c0 = arith.constant 0 : index
    %c0_0 = arith.constant 0 : index
    %0 = vector.load %arg1[%c0, %c0_0] : memref<8x512xbf16, #tpu.memory_space<vmem>>, vector<8x512xbf16>
    %c0_1 = arith.constant 0 : index
    %c0_2 = arith.constant 0 : index
    %1 = vector.load %arg2[%c0_1, %c0_2] : memref<512x128xbf16, #tpu.memory_space<vmem>>, vector<512x128xbf16>
    %cst = arith.constant dense<0.000000e+00> : vector<8x128xf32>
    %2 = tpu.matmul %0, %1, %cst {dimension_numbers = #tpu.dot_dimension_numbers<[1], [0], [0], [1], [0, 0, 1, 1], [], []>} : vector<8x512xbf16>, vector<512x128xbf16>, vector<8x128xf32> -> vector<8x128xf32>
    %c0_3 = arith.constant 0 : index
    %c0_4 = arith.constant 0 : index
    %3 = vector.load %arg3[%c0_3, %c0_4] : memref<1x128xf32, #tpu.memory_space<vmem>>, vector<1x128xf32>
    %4 = vector.broadcast %3 : vector<1x128xf32> to vector<8x128xf32>
    %5 = arith.addf %2, %4 : vector<8x128xf32>
    %cst_5 = arith.constant 0.000000e+00 : f32
    %6 = vector.broadcast %cst_5 : f32 to vector<8x128xf32>
    %7 = arith.maximumf %5, %6 : vector<8x128xf32>
    %8 = arith.truncf %7 : vector<8x128xf32> to vector<8x128xbf16>
    %c0_6 = arith.constant 0 : index
    %c0_7 = arith.constant 0 : index
    %9 = vector.load %arg4[%c0_6, %c0_7] : memref<128x128xbf16, #tpu.memory_space<vmem>>, vector<128x128xbf16>
    %cst_8 = arith.constant dense<0.000000e+00> : vector<8x128xf32>
    %10 = tpu.matmul %8, %9, %cst_8 {dimension_numbers = #tpu.dot_dimension_numbers<[1], [0], [0], [1], [0, 0, 1, 1], [], []>} : vector<8x128xbf16>, vector<128x128xbf16>, vector<8x128xf32> -> vector<8x128xf32>
    %c0_9 = arith.constant 0 : index
    %c0_10 = arith.constant 0 : index
    %11 = vector.load %arg5[%c0_9, %c0_10] : memref<1x128xf32, #tpu.memory_space<vmem>>, vector<1x128xf32>
    %12 = vector.broadcast %11 : vector<1x128xf32> to vector<8x128xf32>
    %13 = arith.addf %10, %12 : vector<8x128xf32>
    %cst_11 = arith.constant 0.000000e+00 : f32
    %14 = vector.broadcast %cst_11 : f32 to vector<8x128xf32>
    %15 = arith.maximumf %13, %14 : vector<8x128xf32>
    %16 = arith.truncf %15 : vector<8x128xf32> to vector<8x128xbf16>
    %c0_12 = arith.constant 0 : index
    %c0_13 = arith.constant 0 : index
    %17 = vector.load %arg6[%c0_12, %c0_13] : memref<128x128xbf16, #tpu.memory_space<vmem>>, vector<128x128xbf16>
    %cst_14 = arith.constant dense<0.000000e+00> : vector<8x128xf32>
    %18 = tpu.matmul %16, %17, %cst_14 {dimension_numbers = #tpu.dot_dimension_numbers<[1], [0], [0], [1], [0, 0, 1, 1], [], []>} : vector<8x128xbf16>, vector<128x128xbf16>, vector<8x128xf32> -> vector<8x128xf32>
    %c0_15 = arith.constant 0 : index
    %c0_16 = arith.constant 0 : index
    %19 = vector.load %arg7[%c0_15, %c0_16] : memref<1x128xf32, #tpu.memory_space<vmem>>, vector<1x128xf32>
    %20 = vector.broadcast %19 : vector<1x128xf32> to vector<8x128xf32>
    %21 = arith.addf %18, %20 : vector<8x128xf32>
    %c0_17 = arith.constant 0 : index
    %c0_18 = arith.constant 0 : index
    %22 = vector.load %arg8[%c0_17, %c0_18] : memref<8x128xf32, #tpu.memory_space<vmem>>, vector<8x128xf32>
    tpu.vector_store %arg8[%c0_17, %c0_18], %21 {strides = array<i32>} : memref<8x128xf32, #tpu.memory_space<vmem>>, vector<8x128xf32>,
    return
  }
  func.func @transform_0(%arg0: i32) -> (i32, i32) {
    %c0_i32 = arith.constant 0 : i32
    %c0_i32_0 = arith.constant 0 : i32
    return %arg0, %c0_i32 : i32, i32
  }
  func.func @transform_1(%arg0: i32) -> (i32, i32) {
    %c0_i32 = arith.constant 0 : i32
    %c0_i32_0 = arith.constant 0 : i32
    %c0_i32_1 = arith.constant 0 : i32
    return %c0_i32, %c0_i32_0 : i32, i32
  }
  func.func @transform_2(%arg0: i32) -> (i32, i32) {
    %c0_i32 = arith.constant 0 : i32
    %c0_i32_0 = arith.constant 0 : i32
    %c0_i32_1 = arith.constant 0 : i32
    return %c0_i32, %c0_i32_0 : i32, i32
  }
  func.func @transform_3(%arg0: i32) -> (i32, i32) {
    %c0_i32 = arith.constant 0 : i32
    %c0_i32_0 = arith.constant 0 : i32
    %c0_i32_1 = arith.constant 0 : i32
    return %c0_i32, %c0_i32_0 : i32, i32
  }
  func.func @transform_4(%arg0: i32) -> (i32, i32) {
    %c0_i32 = arith.constant 0 : i32
    %c0_i32_0 = arith.constant 0 : i32
    %c0_i32_1 = arith.constant 0 : i32
    return %c0_i32, %c0_i32_0 : i32, i32
  }
  func.func @transform_5(%arg0: i32) -> (i32, i32) {
    %c0_i32 = arith.constant 0 : i32
    %c0_i32_0 = arith.constant 0 : i32
    %c0_i32_1 = arith.constant 0 : i32
    return %c0_i32, %c0_i32_0 : i32, i32
  }
  func.func @transform_6(%arg0: i32) -> (i32, i32) {
    %c0_i32 = arith.constant 0 : i32
    %c0_i32_0 = arith.constant 0 : i32
    %c0_i32_1 = arith.constant 0 : i32
    return %c0_i32, %c0_i32_0 : i32, i32
  }
  func.func @transform_7(%arg0: i32) -> (i32, i32) {
    %c0_i32 = arith.constant 0 : i32
    %c0_i32_0 = arith.constant 0 : i32
    return %arg0, %c0_i32 : i32, i32
  }
}

</mosaic_0001>

<llo_original>
// kernel: densenet_forward.1
$region0: #{densenet_forward.1}
  #allocation0 [shape = 'u32[]', space=smem, size = 0x4, offset = 0x4, fixed_abs, tag = 'smem constant byte address 0x4 - core index']
  #allocation1 [shape = 'u32[72,128]{1,0:T(1,128)}', space=vmem, size = 0x9000, scoped, tag = 'internal scratch']
  %s0 = inlined_call_operand.vmem [shape: bf16[8,512], index: 0, kind: input, shape index: {}]
  %s1 = inlined_call_operand.vmem [shape: bf16[512,128], index: 1, kind: input, shape index: {}]
  %s2 = inlined_call_operand.vmem [shape: f32[1,128], index: 2, kind: input, shape index: {}]
  %s3 = inlined_call_operand.vmem [shape: bf16[128,128], index: 3, kind: input, shape index: {}]
  %s4 = inlined_call_operand.vmem [shape: f32[1,128], index: 4, kind: input, shape index: {}]
  %s5 = inlined_call_operand.vmem [shape: bf16[128,128], index: 5, kind: input, shape index: {}]
  %s6 = inlined_call_operand.vmem [shape: f32[1,128], index: 6, kind: input, shape index: {}]
  %s7 = inlined_call_operand.vmem [shape: f32[8,128], index: 7, kind: output, shape index: {}]
  %s8 = sld [smem:[#allocation0]]
  $region38: #{densenet_forward.1} parent=0
    _
  %s10 = ssub.s32 1, %s8
  %s11 = scalar_select 0, %s10, %s8
  // Predicated region
  $region2: #{densenet_forward.1} parent=0 // pred_check
    _
  $region3: #{densenet_forward.1} parent=0 // pred_check_branch
    %13 = sbr.rel (0) target = $region5
  $region4: #{densenet_forward.1} parent=0 // pred_region
    _
  $region5: #{densenet_forward.1} parent=0 // pred_fallthru
    _
  // Predicated region
  $region6: #{densenet_forward.1} parent=0 // pred_check
    _
  $region7: #{densenet_forward.1} parent=0 // pred_check_branch
    %15 = sbr.rel (0) target = $region9
  $region8: #{densenet_forward.1} parent=0 // pred_region
    _
  $region9: #{densenet_forward.1} parent=0 // pred_fallthru
    _
  // Predicated region
  $region10: #{densenet_forward.1} parent=0 // pred_check
    _
  $region11: #{densenet_forward.1} parent=0 // pred_check_branch
    %17 = sbr.rel (0) target = $region13
  $region12: #{densenet_forward.1} parent=0 // pred_region
    _
  $region13: #{densenet_forward.1} parent=0 // pred_fallthru
    _
  // Predicated region
  $region14: #{densenet_forward.1} parent=0 // pred_check
    _
  $region15: #{densenet_forward.1} parent=0 // pred_check_branch
    %19 = sbr.rel (0) target = $region17
  $region16: #{densenet_forward.1} parent=0 // pred_region
    _
  $region17: #{densenet_forward.1} parent=0 // pred_fallthru
    _
  // Predicated region
  $region18: #{densenet_forward.1} parent=0 // pred_check
    _
  $region19: #{densenet_forward.1} parent=0 // pred_check_branch
    %21 = sbr.rel (0) target = $region21
  $region20: #{densenet_forward.1} parent=0 // pred_region
    _
  $region21: #{densenet_forward.1} parent=0 // pred_fallthru
    _
  // Predicated region
  $region22: #{densenet_forward.1} parent=0 // pred_check
    _
  $region23: #{densenet_forward.1} parent=0 // pred_check_branch
    %23 = sbr.rel (0) target = $region25
  $region24: #{densenet_forward.1} parent=0 // pred_region
    _
  $region25: #{densenet_forward.1} parent=0 // pred_fallthru
    _
  // Predicated region
  $region26: #{densenet_forward.1} parent=0 // pred_check
    _
  $region27: #{densenet_forward.1} parent=0 // pred_check_branch
    %25 = sbr.rel (0) target = $region29
  $region28: #{densenet_forward.1} parent=0 // pred_region
    _
  $region29: #{densenet_forward.1} parent=0 // pred_fallthru
    _
  %v26 = vld [vmem:[%s0] sm:$0xff]
  %v27 = vld [vmem:[%s0 + $0x8] sm:$0xff]
  %v28 = vld [vmem:[%s1] sm:$0xf]
  %v29 = vld [vmem:[%s1 + $0x4] sm:$0xf]
  %v30 = vld [vmem:[%s1 + $0x8] sm:$0xf]
  %v31 = vld [vmem:[%s1 + $0xc] sm:$0xf]
  %v32 = vld [vmem:[%s1 + $0x10] sm:$0xf]
  %v33 = vld [vmem:[%s1 + $0x14] sm:$0xf]
  %v34 = vld [vmem:[%s1 + $0x18] sm:$0xf]
  %v35 = vld [vmem:[%s1 + $0x1c] sm:$0xf]
  %v36 = vld [vmem:[%s1 + $0x20] sm:$0xf]
  %v37 = vld [vmem:[%s1 + $0x24] sm:$0xf]
  %v38 = vld [vmem:[%s1 + $0x28] sm:$0xf]
  %v39 = vld [vmem:[%s1 + $0x2c] sm:$0xf]
  %v40 = vld [vmem:[%s1 + $0x30] sm:$0xf]
  %v41 = vld [vmem:[%s1 + $0x34] sm:$0xf]
  %v42 = vld [vmem:[%s1 + $0x38] sm:$0xf]
  %v43 = vld [vmem:[%s1 + $0x3c] sm:$0xf]
  %v44 = vld [vmem:[%s1 + $0x40] sm:$0xf]
  %v45 = vld [vmem:[%s1 + $0x44] sm:$0xf]
  %v46 = vld [vmem:[%s1 + $0x48] sm:$0xf]
  %v47 = vld [vmem:[%s1 + $0x4c] sm:$0xf]
  %v48 = vld [vmem:[%s1 + $0x50] sm:$0xf]
  %v49 = vld [vmem:[%s1 + $0x54] sm:$0xf]
  %v50 = vld [vmem:[%s1 + $0x58] sm:$0xf]
  %v51 = vld [vmem:[%s1 + $0x5c] sm:$0xf]
  %v52 = vld [vmem:[%s1 + $0x60] sm:$0xf]
  %v53 = vld [vmem:[%s1 + $0x64] sm:$0xf]
  %v54 = vld [vmem:[%s1 + $0x68] sm:$0xf]
  %v55 = vld [vmem:[%s1 + $0x6c] sm:$0xf]
  %v56 = vld [vmem:[%s1 + $0x70] sm:$0xf]
  %v57 = vld [vmem:[%s1 + $0x74] sm:$0xf]
  %v58 = vld [vmem:[%s1 + $0x78] sm:$0xf]
  %v59 = vld [vmem:[%s1 + $0x7c] sm:$0xf]
  %v60 = vld [vmem:[%s1 + $0x80] sm:$0xf]
  %v61 = vld [vmem:[%s1 + $0x84] sm:$0xf]
  %v62 = vld [vmem:[%s1 + $0x88] sm:$0xf]
  %v63 = vld [vmem:[%s1 + $0x8c] sm:$0xf]
  %v64 = vld [vmem:[%s1 + $0x90] sm:$0xf]
  %v65 = vld [vmem:[%s1 + $0x94] sm:$0xf]
  %v66 = vld [vmem:[%s1 + $0x98] sm:$0xf]
  %v67 = vld [vmem:[%s1 + $0x9c] sm:$0xf]
  %v68 = vld [vmem:[%s1 + $0xa0] sm:$0xf]
  %v69 = vld [vmem:[%s1 + $0xa4] sm:$0xf]
  %v70 = vld [vmem:[%s1 + $0xa8] sm:$0xf]
  %v71 = vld [vmem:[%s1 + $0xac] sm:$0xf]
  %v72 = vld [vmem:[%s1 + $0xb0] sm:$0xf]
  %v73 = vld [vmem:[%s1 + $0xb4] sm:$0xf]
  %v74 = vld [vmem:[%s1 + $0xb8] sm:$0xf]
  %v75 = vld [vmem:[%s1 + $0xbc] sm:$0xf]
  %v76 = vld [vmem:[%s1 + $0xc0] sm:$0xf]
  %v77 = vld [vmem:[%s1 + $0xc4] sm:$0xf]
  %v78 = vld [vmem:[%s1 + $0xc8] sm:$0xf]
  %v79 = vld [vmem:[%s1 + $0xcc] sm:$0xf]
  %v80 = vld [vmem:[%s1 + $0xd0] sm:$0xf]
  %v81 = vld [vmem:[%s1 + $0xd4] sm:$0xf]
  %v82 = vld [vmem:[%s1 + $0xd8] sm:$0xf]
  %v83 = vld [vmem:[%s1 + $0xdc] sm:$0xf]
  %v84 = vld [vmem:[%s1 + $0xe0] sm:$0xf]
  %v85 = vld [vmem:[%s1 + $0xe4] sm:$0xf]
  %v86 = vld [vmem:[%s1 + $0xe8] sm:$0xf]
  %v87 = vld [vmem:[%s1 + $0xec] sm:$0xf]
  %v88 = vld [vmem:[%s1 + $0xf0] sm:$0xf]
  %v89 = vld [vmem:[%s1 + $0xf4] sm:$0xf]
  %v90 = vld [vmem:[%s1 + $0xf8] sm:$0xf]
  %v91 = vld [vmem:[%s1 + $0xfc] sm:$0xf]
  %v92 = vld [vmem:[%s2] sm:$0x1]
  %v94 = vperm.slane %v92, 0
  %v98 = vunpack.c.l.b16 %v26
  %v99 = vunpack.c.h.b16 %v26
  %v100 = vunpack.c.l.b16 %v27
  %v101 = vunpack.c.h.b16 %v27
  %v102 = vpack.c.b16 %v98, %v98
  %v103 = vpack.c.b16 %v99, %v99
  %v104 = vpack.c.b16 %v100, %v100
  %v105 = vpack.c.b16 %v101, %v101
  %v174 = vunpack.c.l.b16 %v28
  %v175 = vunpack.c.l.b16 %v29
  %v176 = vunpack.c.l.b16 %v30
  %v177 = vunpack.c.l.b16 %v31
  %v178 = vunpack.c.l.b16 %v32
  %v179 = vunpack.c.l.b16 %v33
  %v180 = vunpack.c.l.b16 %v34
  %v181 = vunpack.c.l.b16 %v35
  %v182 = vunpack.c.l.b16 %v36
  %v183 = vunpack.c.l.b16 %v37
  %v184 = vunpack.c.l.b16 %v38
  %v185 = vunpack.c.l.b16 %v39
  %v186 = vunpack.c.l.b16 %v40
  %v187 = vunpack.c.l.b16 %v41
  %v188 = vunpack.c.l.b16 %v42
  %v189 = vunpack.c.l.b16 %v43
  %v190 = vunpack.c.l.b16 %v44
  %v191 = vunpack.c.l.b16 %v45
  %v192 = vunpack.c.l.b16 %v46
  %v193 = vunpack.c.l.b16 %v47
  %v194 = vunpack.c.l.b16 %v48
  %v195 = vunpack.c.l.b16 %v49
  %v196 = vunpack.c.l.b16 %v50
  %v197 = vunpack.c.l.b16 %v51
  %v198 = vunpack.c.l.b16 %v52
  %v199 = vunpack.c.l.b16 %v53
  %v200 = vunpack.c.l.b16 %v54
  %v201 = vunpack.c.l.b16 %v55
  %v202 = vunpack.c.l.b16 %v56
  %v203 = vunpack.c.l.b16 %v57
  %v204 = vunpack.c.l.b16 %v58
  %v205 = vunpack.c.l.b16 %v59
  %v206 = vunpack.c.l.b16 %v60
  %v207 = vunpack.c.l.b16 %v61
  %v208 = vunpack.c.l.b16 %v62
  %v209 = vunpack.c.l.b16 %v63
  %v210 = vunpack.c.l.b16 %v64
  %v211 = vunpack.c.l.b16 %v65
  %v212 = vunpack.c.l.b16 %v66
  %v213 = vunpack.c.l.b16 %v67
  %v214 = vunpack.c.l.b16 %v68
  %v215 = vunpack.c.l.b16 %v69
  %v216 = vunpack.c.l.b16 %v70
  %v217 = vunpack.c.l.b16 %v71
  %v218 = vunpack.c.l.b16 %v72
  %v219 = vunpack.c.l.b16 %v73
  %v220 = vunpack.c.l.b16 %v74
  %v221 = vunpack.c.l.b16 %v75
  %v222 = vunpack.c.l.b16 %v76
  %v223 = vunpack.c.l.b16 %v77
  %v224 = vunpack.c.l.b16 %v78
  %v225 = vunpack.c.l.b16 %v79
  %v226 = vunpack.c.l.b16 %v80
  %v227 = vunpack.c.l.b16 %v81
  %v228 = vunpack.c.l.b16 %v82
  %v229 = vunpack.c.l.b16 %v83
  %v230 = vunpack.c.l.b16 %v84
  %v231 = vunpack.c.l.b16 %v85
  %v232 = vunpack.c.l.b16 %v86
  %v233 = vunpack.c.l.b16 %v87
  %v234 = vunpack.c.l.b16 %v88
  %v235 = vunpack.c.l.b16 %v89
  %v236 = vunpack.c.l.b16 %v90
  %v237 = vunpack.c.l.b16 %v91
  %v238 = vpack.c.b16 %v175, %v174
  %v239 = vpack.c.b16 %v177, %v176
  %v240 = vpack.c.b16 %v179, %v178
  %v241 = vpack.c.b16 %v181, %v180
  %v242 = vpack.c.b16 %v183, %v182
  %v243 = vpack.c.b16 %v185, %v184
  %v244 = vpack.c.b16 %v187, %v186
  %v245 = vpack.c.b16 %v189, %v188
  %v246 = vpack.c.b16 %v191, %v190
  %v247 = vpack.c.b16 %v193, %v192
  %v248 = vpack.c.b16 %v195, %v194
  %v249 = vpack.c.b16 %v197, %v196
  %v250 = vpack.c.b16 %v199, %v198
  %v251 = vpack.c.b16 %v201, %v200
  %v252 = vpack.c.b16 %v203, %v202
  %v253 = vpack.c.b16 %v205, %v204
  %v254 = vpack.c.b16 %v207, %v206
  %v255 = vpack.c.b16 %v209, %v208
  %v256 = vpack.c.b16 %v211, %v210
  %v257 = vpack.c.b16 %v213, %v212
  %v258 = vpack.c.b16 %v215, %v214
  %v259 = vpack.c.b16 %v217, %v216
  %v260 = vpack.c.b16 %v219, %v218
  %v261 = vpack.c.b16 %v221, %v220
  %v262 = vpack.c.b16 %v223, %v222
  %v263 = vpack.c.b16 %v225, %v224
  %v264 = vpack.c.b16 %v227, %v226
  %v265 = vpack.c.b16 %v229, %v228
  %v266 = vpack.c.b16 %v231, %v230
  %v267 = vpack.c.b16 %v233, %v232
  %v268 = vpack.c.b16 %v235, %v234
  %v269 = vpack.c.b16 %v237, %v236
  %302 = vmatpush.bf16.msra.mxu0 %v245
  %303 = vmatpush.bf16.msra.mxu0 %v244
  %304 = vmatpush.bf16.msra.mxu0 %v243
  %305 = vmatpush.bf16.msra.mxu0 %v242
  %306 = vmatpush.bf16.msra.mxu0 %v241
  %307 = vmatpush.bf16.msra.mxu0 %v240
  %308 = vmatpush.bf16.msra.mxu0 %v239
  %309 = vmatpush.bf16.msra.mxu0 %v238
  %310 = vmatmul.bf16.gmra.mxu0 %v102
  %v311 = vpop.f32.mrf.mxu0
  %v312 = vadd.f32 %v94, %v311
  %v313 = vpop.f32.mrf.mxu0
  %314 = vdwg.mxu0
  %315 = vmatpush.bf16.msra.mxu0 %v253
  %316 = vmatpush.bf16.msra.mxu0 %v252
  %317 = vmatpush.bf16.msra.mxu0 %v251
  %318 = vmatpush.bf16.msra.mxu0 %v250
  %319 = vmatpush.bf16.msra.mxu0 %v249
  %320 = vmatpush.bf16.msra.mxu0 %v248
  %321 = vmatpush.bf16.msra.mxu0 %v247
  %322 = vmatpush.bf16.msra.mxu0 %v246
  %323 = vmatmul.bf16.gmra.mxu0 %v103
  %v324 = vpop.f32.mrf.mxu0
  %v325 = vadd.f32 %v312, %v324
  %v326 = vpop.f32.mrf.mxu0
  %327 = vdwg.mxu0
  %328 = vmatpush.bf16.msra.mxu0 %v261
  %329 = vmatpush.bf16.msra.mxu0 %v260
  %330 = vmatpush.bf16.msra.mxu0 %v259
  %331 = vmatpush.bf16.msra.mxu0 %v258
  %332 = vmatpush.bf16.msra.mxu0 %v257
  %333 = vmatpush.bf16.msra.mxu0 %v256
  %334 = vmatpush.bf16.msra.mxu0 %v255
  %335 = vmatpush.bf16.msra.mxu0 %v254
  %336 = vmatmul.bf16.gmra.mxu0 %v104
  %v337 = vpop.f32.mrf.mxu0
  %v338 = vadd.f32 %v325, %v337
  %v339 = vpop.f32.mrf.mxu0
  %340 = vdwg.mxu0
  %341 = vmatpush.bf16.msra.mxu0 %v269
  %342 = vmatpush.bf16.msra.mxu0 %v268
  %343 = vmatpush.bf16.msra.mxu0 %v267
  %344 = vmatpush.bf16.msra.mxu0 %v266
  %345 = vmatpush.bf16.msra.mxu0 %v265
  %346 = vmatpush.bf16.msra.mxu0 %v264
  %347 = vmatpush.bf16.msra.mxu0 %v263
  %348 = vmatpush.bf16.msra.mxu0 %v262
  %349 = vmatmul.bf16.gmra.mxu0 %v105
  %v350 = vpop.f32.mrf.mxu0
  %v351 = vadd.f32 %v338, %v350
  %v352 = vpop.f32.mrf.mxu0
  %353 = vdwg.mxu0
  %v354 = vmax.f32 %v351, 0.0
  %v355 = vpack.c.bf16 %v354, %v354
  %v356 = vld [vmem:[%s3] sm:$0xf]
  %v357 = vld [vmem:[%s3 + $0x4] sm:$0xf]
  %v358 = vld [vmem:[%s3 + $0x8] sm:$0xf]
  %v359 = vld [vmem:[%s3 + $0xc] sm:$0xf]
  %v360 = vld [vmem:[%s3 + $0x10] sm:$0xf]
  %v361 = vld [vmem:[%s3 + $0x14] sm:$0xf]
  %v362 = vld [vmem:[%s3 + $0x18] sm:$0xf]
  %v363 = vld [vmem:[%s3 + $0x1c] sm:$0xf]
  %v364 = vld [vmem:[%s3 + $0x20] sm:$0xf]
  %v365 = vld [vmem:[%s3 + $0x24] sm:$0xf]
  %v366 = vld [vmem:[%s3 + $0x28] sm:$0xf]
  %v367 = vld [vmem:[%s3 + $0x2c] sm:$0xf]
  %v368 = vld [vmem:[%s3 + $0x30] sm:$0xf]
  %v369 = vld [vmem:[%s3 + $0x34] sm:$0xf]
  %v370 = vld [vmem:[%s3 + $0x38] sm:$0xf]
  %v371 = vld [vmem:[%s3 + $0x3c] sm:$0xf]
  %v372 = vld [vmem:[%s4] sm:$0x1]
  %v374 = vperm.slane %v372, 0
  %v392 = vunpack.c.l.b16 %v356
  %v393 = vunpack.c.l.b16 %v357
  %v394 = vunpack.c.l.b16 %v358
  %v395 = vunpack.c.l.b16 %v359
  %v396 = vunpack.c.l.b16 %v360
  %v397 = vunpack.c.l.b16 %v361
  %v398 = vunpack.c.l.b16 %v362
  %v399 = vunpack.c.l.b16 %v363
  %v400 = vunpack.c.l.b16 %v364
  %v401 = vunpack.c.l.b16 %v365
  %v402 = vunpack.c.l.b16 %v366
  %v403 = vunpack.c.l.b16 %v367
  %v404 = vunpack.c.l.b16 %v368
  %v405 = vunpack.c.l.b16 %v369
  %v406 = vunpack.c.l.b16 %v370
  %v407 = vunpack.c.l.b16 %v371
  %v408 = vpack.c.b16 %v393, %v392
  %v409 = vpack.c.b16 %v395, %v394
  %v410 = vpack.c.b16 %v397, %v396
  %v411 = vpack.c.b16 %v399, %v398
  %v412 = vpack.c.b16 %v401, %v400
  %v413 = vpack.c.b16 %v403, %v402
  %v414 = vpack.c.b16 %v405, %v404
  %v415 = vpack.c.b16 %v407, %v406
  %424 = vmatpush.bf16.msra.mxu0 %v415
  %425 = vmatpush.bf16.msra.mxu0 %v414
  %426 = vmatpush.bf16.msra.mxu0 %v413
  %427 = vmatpush.bf16.msra.mxu0 %v412
  %428 = vmatpush.bf16.msra.mxu0 %v411
  %429 = vmatpush.bf16.msra.mxu0 %v410
  %430 = vmatpush.bf16.msra.mxu0 %v409
  %431 = vmatpush.bf16.msra.mxu0 %v408
  %432 = vmatmul.bf16.gmra.mxu0 %v355
  %v433 = vpop.f32.mrf.mxu0
  %v434 = vadd.f32 %v374, %v433
  %v435 = vpop.f32.mrf.mxu0
  %436 = vdwg.mxu0
  %v437 = vmax.f32 %v434, 0.0
  %v438 = vpack.c.bf16 %v437, %v437
  %v439 = vld [vmem:[%s5] sm:$0xf]
  %v440 = vld [vmem:[%s5 + $0x4] sm:$0xf]
  %v441 = vld [vmem:[%s5 + $0x8] sm:$0xf]
  %v442 = vld [vmem:[%s5 + $0xc] sm:$0xf]
  %v443 = vld [vmem:[%s5 + $0x10] sm:$0xf]
  %v444 = vld [vmem:[%s5 + $0x14] sm:$0xf]
  %v445 = vld [vmem:[%s5 + $0x18] sm:$0xf]
  %v446 = vld [vmem:[%s5 + $0x1c] sm:$0xf]
  %v447 = vld [vmem:[%s5 + $0x20] sm:$0xf]
  %v448 = vld [vmem:[%s5 + $0x24] sm:$0xf]
  %v449 = vld [vmem:[%s5 + $0x28] sm:$0xf]
  %v450 = vld [vmem:[%s5 + $0x2c] sm:$0xf]
  %v451 = vld [vmem:[%s5 + $0x30] sm:$0xf]
  %v452 = vld [vmem:[%s5 + $0x34] sm:$0xf]
  %v453 = vld [vmem:[%s5 + $0x38] sm:$0xf]
  %v454 = vld [vmem:[%s5 + $0x3c] sm:$0xf]
  %v455 = vld [vmem:[%s6] sm:$0x1]
  %v457 = vperm.slane %v455, 0
  %v475 = vunpack.c.l.b16 %v439
  %v476 = vunpack.c.l.b16 %v440
  %v477 = vunpack.c.l.b16 %v441
  %v478 = vunpack.c.l.b16 %v442
  %v479 = vunpack.c.l.b16 %v443
  %v480 = vunpack.c.l.b16 %v444
  %v481 = vunpack.c.l.b16 %v445
  %v482 = vunpack.c.l.b16 %v446
  %v483 = vunpack.c.l.b16 %v447
  %v484 = vunpack.c.l.b16 %v448
  %v485 = vunpack.c.l.b16 %v449
  %v486 = vunpack.c.l.b16 %v450
  %v487 = vunpack.c.l.b16 %v451
  %v488 = vunpack.c.l.b16 %v452
  %v489 = vunpack.c.l.b16 %v453
  %v490 = vunpack.c.l.b16 %v454
  %v491 = vpack.c.b16 %v476, %v475
  %v492 = vpack.c.b16 %v478, %v477
  %v493 = vpack.c.b16 %v480, %v479
  %v494 = vpack.c.b16 %v482, %v481
  %v495 = vpack.c.b16 %v484, %v483
  %v496 = vpack.c.b16 %v486, %v485
  %v497 = vpack.c.b16 %v488, %v487
  %v498 = vpack.c.b16 %v490, %v489
  %507 = vmatpush.bf16.msra.mxu0 %v498
  %508 = vmatpush.bf16.msra.mxu0 %v497
  %509 = vmatpush.bf16.msra.mxu0 %v496
  %510 = vmatpush.bf16.msra.mxu0 %v495
  %511 = vmatpush.bf16.msra.mxu0 %v494
  %512 = vmatpush.bf16.msra.mxu0 %v493
  %513 = vmatpush.bf16.msra.mxu0 %v492
  %514 = vmatpush.bf16.msra.mxu0 %v491
  %515 = vmatmul.bf16.gmra.mxu0 %v438
  %v516 = vpop.f32.mrf.mxu0
  %v517 = vadd.f32 %v457, %v516
  %v518 = vpop.f32.mrf.mxu0
  %519 = vdwg.mxu0
  %520 = vst [vmem:[%s7] sm:$0xff] %v517
  // Predicated region
  $region30: #{densenet_forward.1} parent=0 // pred_check
    _
  $region31: #{densenet_forward.1} parent=0 // pred_check_branch
    %522 = sbr.rel (0) target = $region33
  $region32: #{densenet_forward.1} parent=0 // pred_region
    _
  $region33: #{densenet_forward.1} parent=0 // pred_fallthru
    _
  // Predicated region
  $region34: #{densenet_forward.1} parent=0 // pred_check
    _
  $region35: #{densenet_forward.1} parent=0 // pred_check_branch
    %524 = sbr.rel (0) target = $region37
  $region36: #{densenet_forward.1} parent=0 // pred_region
    _
  $region37: #{densenet_forward.1} parent=0 // pred_fallthru
    _

</llo_original>
